<compile_context>
chip_gen: v7x
topology: tpu7x:2x2x1
jax: 0.10.0
libtpu: 0.0.40
codegen_flags: <defaults>
</compile_context>

<pallas_src>
import jax
import jax.numpy as jnp
from jax.experimental import pallas as pl
from jax.experimental.pallas import tpu as pltpu

MODE = "bipolar"       # matches Stability(..., mode='bipolar')
THRESHOLD = 0.05       # module default
LANES = 128
CHUNK_ROWS = 32        # int8 sublane tile; ~12 live vregs of carries per chunk


def _round_up(x, m):
    return -(-x // m) * m


def _make_stability_kernel(threshold, total_T, TB, Rt):
    """Build the kernel with compile-time constants closed over."""
    has_tail = (total_T % TB) != 0
    n_chunks = Rt // CHUNK_ROWS

    def kernel(in_ref, bit_ref, out_ref, one_ref, inp1_ref):
        # grid = (row_tiles, ceil(T/TB)); axis 1 is the sequential time axis.
        tb = pl.program_id(1)

        @pl.when(tb == 0)
        def _init():
            one_ref[...] = jnp.zeros_like(one_ref)        # one_cnt accumulator
            out_ref[...] = jnp.zeros_like(out_ref)        # carries stable_len
            # Hoisted once per row tile: bipolar err = 2*one/len - (1+clamp(in))
            inp1_ref[...] = 1.0 + jnp.clip(in_ref[...], -1.0, 1.0)

        t0 = tb * TB  # global time offset of this block (int32 scalar)

        # Per-step scalars, computed once per grid step, shared by all chunks.
        lens, inv2, thr_j, vmask = [], [], [], []
        for j in range(TB):
            t = t0 + j
            lf = (t + 1).astype(jnp.float32)
            lens.append(lf)
            inv2.append(2.0 / lf)                 # scalar reciprocal, not a vdiv
            if has_tail:
                valid = t < total_T
                thr_j.append(jnp.where(valid, threshold, jnp.inf))
                vmask.append(valid.astype(jnp.float32))
            else:
                thr_j.append(threshold)
                vmask.append(None)

        @pl.loop(0, n_chunks)
        def _chunk(c):
            r = pl.multiple_of(c * CHUNK_ROWS, CHUNK_ROWS)
            rows = pl.ds(r, CHUNK_ROWS)
            one = one_ref[rows, :]                # (32,128) f32 -> 4 vregs
            stab = out_ref[rows, :]
            inp1 = inp1_ref[rows, :]
            for j in range(TB):                   # unrolled time steps
                bit = bit_ref[j, rows, :].astype(jnp.float32)
                if has_tail:
                    bit = bit * vmask[j]          # drop out-of-range tail steps
                one = one + bit
                err = one * inv2[j] - inp1        # one FMA
                # stable_len update: select(|err| > thr, len, stable_len)
                stab = jnp.where(jnp.abs(err) > thr_j[j], lens[j], stab)
            one_ref[rows, :] = one                # single writeback per chunk
            out_ref[rows, :] = stab

        @pl.when(tb == pl.num_programs(1) - 1)
        def _finalize():
            T_f = float(total_T)
            out_ref[...] = 1.0 - jnp.clip(out_ref[...], 1.0, T_f) * (1.0 / T_f)

    return kernel


def stability_pallas(in_value, bitstream, *, threshold=THRESHOLD,
                     row_tile=512, time_block=32):
    """in_value: [...] float; bitstream: [T, ...] with {0,1} entries.

    Pass the bit stream as int8 / bool to avoid an extra full-HBM cast pass.
    """
    T = bitstream.shape[0]
    orig_shape = in_value.shape
    total = in_value.size

    # --- choose tiling ----------------------------------------------------
    R_raw = -(-total // LANES)                    # rows of the flat [R,128] view
    R32 = _round_up(max(R_raw, 1), CHUNK_ROWS)
    Rt = min(row_tile, R32)
    if R32 >= 2 * CHUNK_ROWS:
        # keep >=2 row tiles so the "parallel" axis feeds both v7x TensorCores
        Rt = min(Rt, _round_up(-(-R32 // 2), CHUNK_ROWS))
    Rt = max(CHUNK_ROWS, (Rt // CHUNK_ROWS) * CHUNK_ROWS)
    R_pad = _round_up(R32, Rt)
    pad_elems = R_pad * LANES - total

    TB = max(1, min(time_block, T))               # time tail handled in-kernel
    num_tb = pl.cdiv(T, TB)

    # --- lay out operands ---------------------------------------------------
    in_flat = in_value.reshape(-1).astype(jnp.float32)
    bits = bitstream.reshape(T, -1)
    if bits.dtype != jnp.int8:
        bits = bits.astype(jnp.int8)              # prefer int8/bool upstream
    if pad_elems:
        in_flat = jnp.pad(in_flat, (0, pad_elems))
        bits = jnp.pad(bits, ((0, 0), (0, pad_elems)))
    in_flat = in_flat.reshape(R_pad, LANES)
    bits = bits.reshape(T, R_pad, LANES)

    # --- VMEM budget (double-buffered bits block dominates) ---------------
    bits_block = TB * Rt * LANES                  # int8 bytes
    f32_block = Rt * LANES * 4
    vmem_need = 2 * bits_block + 6 * f32_block    # in/out (x2 bufs) + 2 scratch
    vmem_limit = int(2 * vmem_need) + (4 << 20)

    kernel = _make_stability_kernel(float(threshold), T, TB, Rt)

    out = pl.pallas_call(
        kernel,
        out_shape=jax.ShapeDtypeStruct((R_pad, LANES), jnp.float32),
        grid_spec=pltpu.PrefetchScalarGridSpec(
            num_scalar_prefetch=0,
            grid=(R_pad // Rt, num_tb),                           # time axis last
            in_specs=[
                pl.BlockSpec((Rt, LANES), lambda r, t: (r, 0)),        # in_value
                pl.BlockSpec((TB, Rt, LANES), lambda r, t: (t, r, 0)),  # int8 bits
            ],
            out_specs=pl.BlockSpec((Rt, LANES), lambda r, t: (r, 0)),   # stability
            scratch_shapes=[
                pltpu.VMEM((Rt, LANES), jnp.float32),   # one_cnt accumulator
                pltpu.VMEM((Rt, LANES), jnp.float32),   # 1 + clamp(in_value)
            ],
        ),
        compiler_params=pltpu.CompilerParams(
            dimension_semantics=("parallel", "arbitrary"),
            vmem_limit_bytes=vmem_limit,
        ),
    )(in_flat, bits)

    return out.reshape(-1)[:total].reshape(orig_shape)


def stability_reference(in_value, bitstream_f32):
    """Pure-JAX reference mirroring the PyTorch Monitor/forward loop."""
    T = bitstream_f32.shape[0]
    one_cnt = jnp.zeros_like(in_value)
    stable_len = jnp.zeros_like(in_value)
    in_clamped = jnp.clip(in_value, -1.0, 1.0)
    for t in range(1, T + 1):
        one_cnt = one_cnt + bitstream_f32[t - 1]
        out_pp = one_cnt / t
        if MODE == "bipolar":
            out_pp = out_pp * 2.0 - 1.0
        err = out_pp - in_clamped
        stable_len = stable_len + (jnp.abs(err) > THRESHOLD).astype(jnp.float32) * (
            t - stable_len
        )
    return 1.0 - jnp.clip(stable_len, 1.0, float(T)) / float(T)


if __name__ == "__main__":
    key = jax.random.PRNGKey(0)
    k_val, k_bits = jax.random.split(key)

    N, Cc, H, W = 2, 4, 16, 16          # NCHW -> 2048 elems -> (16, 128) flat view
    T = 8                               # bit-stream length (Monitor calls)

    in_value = jax.random.uniform(k_val, (N, Cc, H, W), jnp.float32, -1.0, 1.0)
    # Bipolar stochastic bit stream: P(bit=1) = (x + 1) / 2
    p_one = (jnp.clip(in_value, -1.0, 1.0) + 1.0) * 0.5
    bits_bool = jax.random.uniform(k_bits, (T, N, Cc, H, W), jnp.float32) < p_one[None]
    bits_i8 = bits_bool.astype(jnp.int8)     # kernel streams int8 bits directly

    out = stability_pallas(in_value, bits_i8)
    out = jax.block_until_ready(out)

    ref = stability_reference(in_value, bits_bool.astype(jnp.float32))
    assert out.shape == (N, Cc, H, W)
    assert jnp.allclose(out, ref, atol=1e-5, rtol=1e-5)

    print("KERNEL_OK")
</pallas_src>

<mosaic_0001>
module attributes {stable_mosaic.version = 11 : i64} {
  func.func @kernel(%arg0: i32, %arg1: i32, %arg2: memref<32x128xf32, #tpu.memory_space<vmem>>, %arg3: memref<8x32x128xi8, #tpu.memory_space<vmem>>, %arg4: memref<32x128xf32, #tpu.memory_space<vmem>>, %arg5: memref<32x128xf32, #tpu.memory_space<vmem>>, %arg6: memref<32x128xf32, #tpu.memory_space<vmem>>) attributes {dimension_semantics = [#tpu.dimension_semantics<parallel>, #tpu.dimension_semantics<arbitrary>], iteration_bounds = array<i64: 1, 1>, scalar_prefetch = 0 : i64, scratch_operands = 2 : i64, tpu.core_type = #tpu.core_type<tc>, window_params = [{transform_indices = @transform_0, window_bounds = array<i64: 32, 128>}, {transform_indices = @transform_1, window_bounds = array<i64: 8, 32, 128>}, {transform_indices = @transform_2, window_bounds = array<i64: 32, 128>}]} {
    %c0_i32 = arith.constant 0 : i32
    %0 = arith.cmpi eq, %arg1, %c0_i32 : i32
    %1 = arith.extui %0 : i1 to i32
    %c0_i32_0 = arith.constant 0 : i32
    %2 = arith.cmpi ne, %1, %c0_i32_0 : i32
    scf.if %2 {
      %cst_44 = arith.constant 0.000000e+00 : f32
      %157 = vector.broadcast %cst_44 : f32 to vector<32x128xf32>
      %c0_45 = arith.constant 0 : index
      %c0_46 = arith.constant 0 : index
      %158 = vector.load %arg5[%c0_45, %c0_46] : memref<32x128xf32, #tpu.memory_space<vmem>>, vector<32x128xf32>
      tpu.vector_store %arg5[%c0_45, %c0_46], %157 {strides = array<i32>} : memref<32x128xf32, #tpu.memory_space<vmem>>, vector<32x128xf32>,
      %cst_47 = arith.constant 0.000000e+00 : f32
      %159 = vector.broadcast %cst_47 : f32 to vector<32x128xf32>
      %c0_48 = arith.constant 0 : index
      %c0_49 = arith.constant 0 : index
      %160 = vector.load %arg4[%c0_48, %c0_49] : memref<32x128xf32, #tpu.memory_space<vmem>>, vector<32x128xf32>
      tpu.vector_store %arg4[%c0_48, %c0_49], %159 {strides = array<i32>} : memref<32x128xf32, #tpu.memory_space<vmem>>, vector<32x128xf32>,
      %c0_50 = arith.constant 0 : index
      %c0_51 = arith.constant 0 : index
      %161 = vector.load %arg2[%c0_50, %c0_51] : memref<32x128xf32, #tpu.memory_space<vmem>>, vector<32x128xf32>
      %cst_52 = arith.constant -1.000000e+00 : f32
      %cst_53 = arith.constant 1.000000e+00 : f32
      %162 = vector.broadcast %cst_52 : f32 to vector<32x128xf32>
      %163 = arith.maximumf %162, %161 : vector<32x128xf32>
      %164 = vector.broadcast %cst_53 : f32 to vector<32x128xf32>
      %165 = arith.minimumf %164, %163 : vector<32x128xf32>
      %cst_54 = arith.constant 1.000000e+00 : f32
      %166 = vector.broadcast %cst_54 : f32 to vector<32x128xf32>
      %167 = arith.addf %166, %165 : vector<32x128xf32>
      %c0_55 = arith.constant 0 : index
      %c0_56 = arith.constant 0 : index
      %168 = vector.load %arg6[%c0_55, %c0_56] : memref<32x128xf32, #tpu.memory_space<vmem>>, vector<32x128xf32>
      tpu.vector_store %arg6[%c0_55, %c0_56], %167 {strides = array<i32>} : memref<32x128xf32, #tpu.memory_space<vmem>>, vector<32x128xf32>,
    } else {
    }
    %c8_i32 = arith.constant 8 : i32
    %3 = arith.muli %arg1, %c8_i32 : i32
    %c0_i32_1 = arith.constant 0 : i32
    %4 = arith.addi %3, %c0_i32_1 : i32
    %c1_i32 = arith.constant 1 : i32
    %5 = arith.addi %4, %c1_i32 : i32
    %6 = arith.sitofp %5 : i32 to f32
    %cst = arith.constant 2.000000e+00 : f32
    %7 = arith.divf %cst, %6 : f32
    %c1_i32_2 = arith.constant 1 : i32
    %8 = arith.addi %3, %c1_i32_2 : i32
    %c1_i32_3 = arith.constant 1 : i32
    %9 = arith.addi %8, %c1_i32_3 : i32
    %10 = arith.sitofp %9 : i32 to f32
    %cst_4 = arith.constant 2.000000e+00 : f32
    %11 = arith.divf %cst_4, %10 : f32
    %c2_i32 = arith.constant 2 : i32
    %12 = arith.addi %3, %c2_i32 : i32
    %c1_i32_5 = arith.constant 1 : i32
    %13 = arith.addi %12, %c1_i32_5 : i32
    %14 = arith.sitofp %13 : i32 to f32
    %cst_6 = arith.constant 2.000000e+00 : f32
    %15 = arith.divf %cst_6, %14 : f32
    %c3_i32 = arith.constant 3 : i32
    %16 = arith.addi %3, %c3_i32 : i32
    %c1_i32_7 = arith.constant 1 : i32
    %17 = arith.addi %16, %c1_i32_7 : i32
    %18 = arith.sitofp %17 : i32 to f32
    %cst_8 = arith.constant 2.000000e+00 : f32
    %19 = arith.divf %cst_8, %18 : f32
    %c4_i32 = arith.constant 4 : i32
    %20 = arith.addi %3, %c4_i32 : i32
    %c1_i32_9 = arith.constant 1 : i32
    %21 = arith.addi %20, %c1_i32_9 : i32
    %22 = arith.sitofp %21 : i32 to f32
    %cst_10 = arith.constant 2.000000e+00 : f32
    %23 = arith.divf %cst_10, %22 : f32
    %c5_i32 = arith.constant 5 : i32
    %24 = arith.addi %3, %c5_i32 : i32
    %c1_i32_11 = arith.constant 1 : i32
    %25 = arith.addi %24, %c1_i32_11 : i32
    %26 = arith.sitofp %25 : i32 to f32
    %cst_12 = arith.constant 2.000000e+00 : f32
    %27 = arith.divf %cst_12, %26 : f32
    %c6_i32 = arith.constant 6 : i32
    %28 = arith.addi %3, %c6_i32 : i32
    %c1_i32_13 = arith.constant 1 : i32
    %29 = arith.addi %28, %c1_i32_13 : i32
    %30 = arith.sitofp %29 : i32 to f32
    %cst_14 = arith.constant 2.000000e+00 : f32
    %31 = arith.divf %cst_14, %30 : f32
    %c7_i32 = arith.constant 7 : i32
    %32 = arith.addi %3, %c7_i32 : i32
    %c1_i32_15 = arith.constant 1 : i32
    %33 = arith.addi %32, %c1_i32_15 : i32
    %34 = arith.sitofp %33 : i32 to f32
    %cst_16 = arith.constant 2.000000e+00 : f32
    %35 = arith.divf %cst_16, %34 : f32
    %c0_i32_17 = arith.constant 0 : i32
    %c1_i32_18 = arith.constant 1 : i32
    %36 = arith.muli %c0_i32_17, %c1_i32_18 : i32
    %c0_i32_19 = arith.constant 0 : i32
    %37 = arith.addi %c0_i32_19, %36 : i32
    %c32_i32 = arith.constant 32 : i32
    %38 = arith.muli %37, %c32_i32 : i32
    %39 = tpu.assume_multiple %38, 32 : i32
    %40 = arith.index_cast %39 : i32 to index
    %c0 = arith.constant 0 : index
    %41 = vector.load %arg5[%40, %c0] : memref<32x128xf32, #tpu.memory_space<vmem>>, vector<32x128xf32>
    %42 = arith.index_cast %39 : i32 to index
    %c0_20 = arith.constant 0 : index
    %43 = vector.load %arg4[%42, %c0_20] : memref<32x128xf32, #tpu.memory_space<vmem>>, vector<32x128xf32>
    %44 = arith.index_cast %39 : i32 to index
    %c0_21 = arith.constant 0 : index
    %45 = vector.load %arg6[%44, %c0_21] : memref<32x128xf32, #tpu.memory_space<vmem>>, vector<32x128xf32>
    %c0_22 = arith.constant 0 : index
    %46 = arith.index_cast %39 : i32 to index
    %c0_23 = arith.constant 0 : index
    %47 = vector.load %arg3[%c0_22, %46, %c0_23] : memref<8x32x128xi8, #tpu.memory_space<vmem>>, vector<1x32x128xi8>
    %48 = vector.shape_cast %47 : vector<1x32x128xi8> to vector<32x128xi8>
    %49 = arith.sitofp %48 : vector<32x128xi8> to vector<32x128xf32>
    %50 = arith.addf %41, %49 : vector<32x128xf32>
    %51 = vector.broadcast %7 : f32 to vector<32x128xf32>
    %52 = arith.mulf %50, %51 : vector<32x128xf32>
    %53 = arith.subf %52, %45 : vector<32x128xf32>
    %54 = math.absf %53 : vector<32x128xf32>
    %cst_24 = arith.constant 5.000000e-02 : f32
    %55 = vector.broadcast %cst_24 : f32 to vector<32x128xf32>
    %56 = arith.cmpf ogt, %54, %55 : vector<32x128xf32>
    %57 = vector.broadcast %6 : f32 to vector<32x128xf32>
    %58 = arith.select %56, %57, %43 : vector<32x128xi1>, vector<32x128xf32>
    %c1 = arith.constant 1 : index
    %59 = arith.index_cast %39 : i32 to index
    %c0_25 = arith.constant 0 : index
    %60 = vector.load %arg3[%c1, %59, %c0_25] : memref<8x32x128xi8, #tpu.memory_space<vmem>>, vector<1x32x128xi8>
    %61 = vector.shape_cast %60 : vector<1x32x128xi8> to vector<32x128xi8>
    %62 = arith.sitofp %61 : vector<32x128xi8> to vector<32x128xf32>
    %63 = arith.addf %50, %62 : vector<32x128xf32>
    %64 = vector.broadcast %11 : f32 to vector<32x128xf32>
    %65 = arith.mulf %63, %64 : vector<32x128xf32>
    %66 = arith.subf %65, %45 : vector<32x128xf32>
    %67 = math.absf %66 : vector<32x128xf32>
    %cst_26 = arith.constant 5.000000e-02 : f32
    %68 = vector.broadcast %cst_26 : f32 to vector<32x128xf32>
    %69 = arith.cmpf ogt, %67, %68 : vector<32x128xf32>
    %70 = vector.broadcast %10 : f32 to vector<32x128xf32>
    %71 = arith.select %69, %70, %58 : vector<32x128xi1>, vector<32x128xf32>
    %c2 = arith.constant 2 : index
    %72 = arith.index_cast %39 : i32 to index
    %c0_27 = arith.constant 0 : index
    %73 = vector.load %arg3[%c2, %72, %c0_27] : memref<8x32x128xi8, #tpu.memory_space<vmem>>, vector<1x32x128xi8>
    %74 = vector.shape_cast %73 : vector<1x32x128xi8> to vector<32x128xi8>
    %75 = arith.sitofp %74 : vector<32x128xi8> to vector<32x128xf32>
    %76 = arith.addf %63, %75 : vector<32x128xf32>
    %77 = vector.broadcast %15 : f32 to vector<32x128xf32>
    %78 = arith.mulf %76, %77 : vector<32x128xf32>
    %79 = arith.subf %78, %45 : vector<32x128xf32>
    %80 = math.absf %79 : vector<32x128xf32>
    %cst_28 = arith.constant 5.000000e-02 : f32
    %81 = vector.broadcast %cst_28 : f32 to vector<32x128xf32>
    %82 = arith.cmpf ogt, %80, %81 : vector<32x128xf32>
    %83 = vector.broadcast %14 : f32 to vector<32x128xf32>
    %84 = arith.select %82, %83, %71 : vector<32x128xi1>, vector<32x128xf32>
    %c3 = arith.constant 3 : index
    %85 = arith.index_cast %39 : i32 to index
    %c0_29 = arith.constant 0 : index
    %86 = vector.load %arg3[%c3, %85, %c0_29] : memref<8x32x128xi8, #tpu.memory_space<vmem>>, vector<1x32x128xi8>
    %87 = vector.shape_cast %86 : vector<1x32x128xi8> to vector<32x128xi8>
    %88 = arith.sitofp %87 : vector<32x128xi8> to vector<32x128xf32>
    %89 = arith.addf %76, %88 : vector<32x128xf32>
    %90 = vector.broadcast %19 : f32 to vector<32x128xf32>
    %91 = arith.mulf %89, %90 : vector<32x128xf32>
    %92 = arith.subf %91, %45 : vector<32x128xf32>
    %93 = math.absf %92 : vector<32x128xf32>
    %cst_30 = arith.constant 5.000000e-02 : f32
    %94 = vector.broadcast %cst_30 : f32 to vector<32x128xf32>
    %95 = arith.cmpf ogt, %93, %94 : vector<32x128xf32>
    %96 = vector.broadcast %18 : f32 to vector<32x128xf32>
    %97 = arith.select %95, %96, %84 : vector<32x128xi1>, vector<32x128xf32>
    %c4 = arith.constant 4 : index
    %98 = arith.index_cast %39 : i32 to index
    %c0_31 = arith.constant 0 : index
    %99 = vector.load %arg3[%c4, %98, %c0_31] : memref<8x32x128xi8, #tpu.memory_space<vmem>>, vector<1x32x128xi8>
    %100 = vector.shape_cast %99 : vector<1x32x128xi8> to vector<32x128xi8>
    %101 = arith.sitofp %100 : vector<32x128xi8> to vector<32x128xf32>
    %102 = arith.addf %89, %101 : vector<32x128xf32>
    %103 = vector.broadcast %23 : f32 to vector<32x128xf32>
    %104 = arith.mulf %102, %103 : vector<32x128xf32>
    %105 = arith.subf %104, %45 : vector<32x128xf32>
    %106 = math.absf %105 : vector<32x128xf32>
    %cst_32 = arith.constant 5.000000e-02 : f32
    %107 = vector.broadcast %cst_32 : f32 to vector<32x128xf32>
    %108 = arith.cmpf ogt, %106, %107 : vector<32x128xf32>
    %109 = vector.broadcast %22 : f32 to vector<32x128xf32>
    %110 = arith.select %108, %109, %97 : vector<32x128xi1>, vector<32x128xf32>
    %c5 = arith.constant 5 : index
    %111 = arith.index_cast %39 : i32 to index
    %c0_33 = arith.constant 0 : index
    %112 = vector.load %arg3[%c5, %111, %c0_33] : memref<8x32x128xi8, #tpu.memory_space<vmem>>, vector<1x32x128xi8>
    %113 = vector.shape_cast %112 : vector<1x32x128xi8> to vector<32x128xi8>
    %114 = arith.sitofp %113 : vector<32x128xi8> to vector<32x128xf32>
    %115 = arith.addf %102, %114 : vector<32x128xf32>
    %116 = vector.broadcast %27 : f32 to vector<32x128xf32>
    %117 = arith.mulf %115, %116 : vector<32x128xf32>
    %118 = arith.subf %117, %45 : vector<32x128xf32>
    %119 = math.absf %118 : vector<32x128xf32>
    %cst_34 = arith.constant 5.000000e-02 : f32
    %120 = vector.broadcast %cst_34 : f32 to vector<32x128xf32>
    %121 = arith.cmpf ogt, %119, %120 : vector<32x128xf32>
    %122 = vector.broadcast %26 : f32 to vector<32x128xf32>
    %123 = arith.select %121, %122, %110 : vector<32x128xi1>, vector<32x128xf32>
    %c6 = arith.constant 6 : index
    %124 = arith.index_cast %39 : i32 to index
    %c0_35 = arith.constant 0 : index
    %125 = vector.load %arg3[%c6, %124, %c0_35] : memref<8x32x128xi8, #tpu.memory_space<vmem>>, vector<1x32x128xi8>
    %126 = vector.shape_cast %125 : vector<1x32x128xi8> to vector<32x128xi8>
    %127 = arith.sitofp %126 : vector<32x128xi8> to vector<32x128xf32>
    %128 = arith.addf %115, %127 : vector<32x128xf32>
    %129 = vector.broadcast %31 : f32 to vector<32x128xf32>
    %130 = arith.mulf %128, %129 : vector<32x128xf32>
    %131 = arith.subf %130, %45 : vector<32x128xf32>
    %132 = math.absf %131 : vector<32x128xf32>
    %cst_36 = arith.constant 5.000000e-02 : f32
    %133 = vector.broadcast %cst_36 : f32 to vector<32x128xf32>
    %134 = arith.cmpf ogt, %132, %133 : vector<32x128xf32>
    %135 = vector.broadcast %30 : f32 to vector<32x128xf32>
    %136 = arith.select %134, %135, %123 : vector<32x128xi1>, vector<32x128xf32>
    %c7 = arith.constant 7 : index
    %137 = arith.index_cast %39 : i32 to index
    %c0_37 = arith.constant 0 : index
    %138 = vector.load %arg3[%c7, %137, %c0_37] : memref<8x32x128xi8, #tpu.memory_space<vmem>>, vector<1x32x128xi8>
    %139 = vector.shape_cast %138 : vector<1x32x128xi8> to vector<32x128xi8>
    %140 = arith.sitofp %139 : vector<32x128xi8> to vector<32x128xf32>
    %141 = arith.addf %128, %140 : vector<32x128xf32>
    %142 = vector.broadcast %35 : f32 to vector<32x128xf32>
    %143 = arith.mulf %141, %142 : vector<32x128xf32>
    %144 = arith.subf %143, %45 : vector<32x128xf32>
    %145 = math.absf %144 : vector<32x128xf32>
    %cst_38 = arith.constant 5.000000e-02 : f32
    %146 = vector.broadcast %cst_38 : f32 to vector<32x128xf32>
    %147 = arith.cmpf ogt, %145, %146 : vector<32x128xf32>
    %148 = vector.broadcast %34 : f32 to vector<32x128xf32>
    %149 = arith.select %147, %148, %136 : vector<32x128xi1>, vector<32x128xf32>
    %150 = arith.index_cast %39 : i32 to index
    %c0_39 = arith.constant 0 : index
    %151 = vector.load %arg5[%150, %c0_39] : memref<32x128xf32, #tpu.memory_space<vmem>>, vector<32x128xf32>
    tpu.vector_store %arg5[%150, %c0_39], %141 {strides = array<i32>} : memref<32x128xf32, #tpu.memory_space<vmem>>, vector<32x128xf32>,
    %152 = arith.index_cast %39 : i32 to index
    %c0_40 = arith.constant 0 : index
    %153 = vector.load %arg4[%152, %c0_40] : memref<32x128xf32, #tpu.memory_space<vmem>>, vector<32x128xf32>
    tpu.vector_store %arg4[%152, %c0_40], %149 {strides = array<i32>} : memref<32x128xf32, #tpu.memory_space<vmem>>, vector<32x128xf32>,
    %c1_i32_41 = arith.constant 1 : i32
    %c0_i32_42 = arith.constant 0 : i32
    %154 = arith.cmpi eq, %arg1, %c0_i32_42 : i32
    %155 = arith.extui %154 : i1 to i32
    %c0_i32_43 = arith.constant 0 : i32
    %156 = arith.cmpi ne, %155, %c0_i32_43 : i32
    scf.if %156 {
      %c0_44 = arith.constant 0 : index
      %c0_45 = arith.constant 0 : index
      %157 = vector.load %arg4[%c0_44, %c0_45] : memref<32x128xf32, #tpu.memory_space<vmem>>, vector<32x128xf32>
      %cst_46 = arith.constant 1.000000e+00 : f32
      %cst_47 = arith.constant 8.000000e+00 : f32
      %158 = vector.broadcast %cst_46 : f32 to vector<32x128xf32>
      %159 = arith.maximumf %158, %157 : vector<32x128xf32>
      %160 = vector.broadcast %cst_47 : f32 to vector<32x128xf32>
      %161 = arith.minimumf %160, %159 : vector<32x128xf32>
      %cst_48 = arith.constant 1.250000e-01 : f32
      %162 = vector.broadcast %cst_48 : f32 to vector<32x128xf32>
      %163 = arith.mulf %161, %162 : vector<32x128xf32>
      %cst_49 = arith.constant 1.000000e+00 : f32
      %164 = vector.broadcast %cst_49 : f32 to vector<32x128xf32>
      %165 = arith.subf %164, %163 : vector<32x128xf32>
      %c0_50 = arith.constant 0 : index
      %c0_51 = arith.constant 0 : index
      %166 = vector.load %arg4[%c0_50, %c0_51] : memref<32x128xf32, #tpu.memory_space<vmem>>, vector<32x128xf32>
      tpu.vector_store %arg4[%c0_50, %c0_51], %165 {strides = array<i32>} : memref<32x128xf32, #tpu.memory_space<vmem>>, vector<32x128xf32>,
    } else {
    }
    return
  }
  func.func @transform_0(%arg0: i32, %arg1: i32) -> (i32, i32) {
    %c0_i32 = arith.constant 0 : i32
    %c0_i32_0 = arith.constant 0 : i32
    return %arg0, %c0_i32 : i32, i32
  }
  func.func @transform_1(%arg0: i32, %arg1: i32) -> (i32, i32, i32) {
    %c0_i32 = arith.constant 0 : i32
    %c0_i32_0 = arith.constant 0 : i32
    return %arg1, %arg0, %c0_i32 : i32, i32, i32
  }
  func.func @transform_2(%arg0: i32, %arg1: i32) -> (i32, i32) {
    %c0_i32 = arith.constant 0 : i32
    %c0_i32_0 = arith.constant 0 : i32
    return %arg0, %c0_i32 : i32, i32
  }
}

</mosaic_0001>

<llo_original>
// kernel: tpu_custom_call.1
$region0: #{tpu_custom_call.1}
  #allocation0 [shape = 'u32[]', space=smem, size = 0x4, offset = 0x4, fixed_abs, tag = 'smem constant byte address 0x4 - core index']
  #allocation1 [shape = 'u32[144,128]{1,0:T(1,128)}', space=vmem, size = 0x12000, scoped, tag = 'internal scratch']
  #allocation2 [shape = 'f32[32,128]{1,0:T(8,128)}', space=vmem, size = 0x4000, scoped, tag = 'scratch operand']
  #allocation3 [shape = 'f32[32,128]{1,0:T(8,128)}', space=vmem, size = 0x4000, scoped, tag = 'scratch operand']
  %s0 = inlined_call_operand.hbm [shape: f32[32,128], index: 0, kind: input, shape index: {}]
  %s1 = inlined_call_operand.hbm [shape: s8[8,32,128], index: 1, kind: input, shape index: {}]
  %s2 = inlined_call_operand.hbm [shape: f32[32,128], index: 2, kind: output, shape index: {}]
  %s3 = sld [smem:[#allocation0]]
  $region34: #{tpu_custom_call.1} parent=0
    _
  %s5 = ssub.s32 1, %s3
  %s6 = scalar_select 0, %s5, %s3
  $region1: #{tpu_custom_call.1} parent=0
    #allocation4 [shape = 'u8[16384]{0}', space=vmem, size = 0x4000, scoped, tag = 'input window, operand 0, single buffered']
    #allocation5 [shape = 's32[1]{0}', space=sflag, size = 0x4, scoped, tag = 'scoped memory for tpu_custom_call.1']
    #allocation6 [shape = 's32[1]{0}', space=sflag, size = 0x4, scoped, tag = 'scoped memory for tpu_custom_call.1']
    #allocation7 [shape = 'u8[32768]{0}', space=vmem, size = 0x8000, scoped, tag = 'input window, operand 1, single buffered']
    #allocation8 [shape = 's32[1]{0}', space=sflag, size = 0x4, scoped, tag = 'scoped memory for tpu_custom_call.1']
    #allocation9 [shape = 'u8[16384]{0}', space=vmem, size = 0x4000, scoped, tag = 'output window, operand 0, single buffered']
    %7 = vsyncpa [#allocation5], 0
    %8 = vsyncpa [#allocation8], 0
    %9 = vsyncpa [#allocation6], 0
    // Predicated region
    $region2: #{tpu_custom_call.1} parent=1 // pred_check
      _
    $region3: #{tpu_custom_call.1} parent=1 // pred_check_branch
      %11 = sbr.rel (0) target = $region5
    $region4: #{tpu_custom_call.1} parent=1 // pred_region
      %s13 = ssub.s32 512, 512
      %14 = vsyncadd [#allocation5], %s13
      %s15 = sshll.u32 [#allocation4], 4
      %s16 = int_to_ptr.vmem [resolvable:$true] %s15
      %21 = dma.hbm_to_vmem [thread:$0]  %s0, 512, %s16, [#allocation5], 128, 128, 8
    $region5: #{tpu_custom_call.1} parent=1 // pred_fallthru
      _
    // Predicated region
    $region6: #{tpu_custom_call.1} parent=1 // pred_check
      _
    $region7: #{tpu_custom_call.1} parent=1 // pred_check_branch
      %23 = sbr.rel (0) target = $region9
    $region8: #{tpu_custom_call.1} parent=1 // pred_region
      %s25 = ssub.s32 1024, 1024
      %26 = vsyncadd [#allocation8], %s25
      %s27 = sshll.u32 [#allocation7], 4
      %s28 = int_to_ptr.vmem [resolvable:$true] %s27
      %33 = dma.hbm_to_vmem [thread:$0]  %s1, 1024, %s28, [#allocation8], 128, 128, 8
    $region9: #{tpu_custom_call.1} parent=1 // pred_fallthru
      _
    // Predicated region
    $region10: #{tpu_custom_call.1} parent=1 // pred_check
      _
    $region11: #{tpu_custom_call.1} parent=1 // pred_check_branch
      %35 = sbr.rel (0) target = $region13
    $region12: #{tpu_custom_call.1} parent=1 // pred_region
      %36 = dma.done [#allocation5], 512
    $region13: #{tpu_custom_call.1} parent=1 // pred_fallthru
      _
    // Predicated region
    $region14: #{tpu_custom_call.1} parent=1 // pred_check
      _
    $region15: #{tpu_custom_call.1} parent=1 // pred_check_branch
      %38 = sbr.rel (0) target = $region17
    $region16: #{tpu_custom_call.1} parent=1 // pred_region
      %39 = dma.done [#allocation8], 1024
    $region17: #{tpu_custom_call.1} parent=1 // pred_fallthru
      _
    %p40 = scmp.eq.s32.totalorder 0, 0
    // Predicated region
    $region18: #{tpu_custom_call.1} parent=1 // pred_check
      %p41 = pneg %p40
    $region19: #{tpu_custom_call.1} parent=1 // pred_check_branch
      %43 = sbr.rel (%p41) target = $region21
    $region20: #{tpu_custom_call.1} parent=1 // pred_region
      %44 = vst [vmem:[#allocation2] sm:$0xff] 0.0
      %45 = vst [vmem:[#allocation2 + $0x8] sm:$0xff] 0.0
      %46 = vst [vmem:[#allocation2 + $0x10] sm:$0xff] 0.0
      %47 = vst [vmem:[#allocation2 + $0x18] sm:$0xff] 0.0
      %48 = vst [vmem:[#allocation9] sm:$0xff] 0.0
      %49 = vst [vmem:[#allocation9 + $0x8] sm:$0xff] 0.0
      %50 = vst [vmem:[#allocation9 + $0x10] sm:$0xff] 0.0
      %51 = vst [vmem:[#allocation9 + $0x18] sm:$0xff] 0.0
      %v52 = vld [vmem:[#allocation4] sm:$0xff]
      %v53 = vld [vmem:[#allocation4 + $0x8] sm:$0xff]
      %v54 = vld [vmem:[#allocation4 + $0x10] sm:$0xff]
      %v55 = vld [vmem:[#allocation4 + $0x18] sm:$0xff]
      %v56 = vmax.f32 %v52, -1.0
      %v57 = vmax.f32 %v53, -1.0
      %v58 = vmax.f32 %v54, -1.0
      %v59 = vmax.f32 %v55, -1.0
      %v60 = vmin.f32 %v56, 1.0
      %v61 = vmin.f32 %v57, 1.0
      %v62 = vmin.f32 %v58, 1.0
      %v63 = vmin.f32 %v59, 1.0
      %v64 = vadd.f32 %v60, 1.0
      %v65 = vadd.f32 %v61, 1.0
      %v66 = vadd.f32 %v62, 1.0
      %v67 = vadd.f32 %v63, 1.0
      %68 = vst [vmem:[#allocation3] sm:$0xff] %v64
      %69 = vst [vmem:[#allocation3 + $0x8] sm:$0xff] %v65
      %70 = vst [vmem:[#allocation3 + $0x10] sm:$0xff] %v66
      %71 = vst [vmem:[#allocation3 + $0x18] sm:$0xff] %v67
    $region21: #{tpu_custom_call.1} parent=1 // pred_fallthru
      _
    %s72 = smul.u32 0, 8
    %s73 = sadd.s32 %s72, 1
    %s74 = scvt.s32.f32 %s73
    %v75 = vstv %s74
    %v76 = vrcp.pop %v75
    %s77 = vtos %v76
    %s78 = smul.f32 2.0, %s77
    %s79 = sadd.s32 %s72, 2
    %s80 = scvt.s32.f32 %s79
    %v81 = vstv %s80
    %v82 = vrcp.pop %v81
    %s83 = vtos %v82
    %s84 = smul.f32 2.0, %s83
    %s85 = sadd.s32 %s72, 3
    %s86 = scvt.s32.f32 %s85
    %v87 = vstv %s86
    %v88 = vrcp.pop %v87
    %s89 = vtos %v88
    %s90 = smul.f32 2.0, %s89
    %s91 = sadd.s32 %s72, 4
    %s92 = scvt.s32.f32 %s91
    %v93 = vstv %s92
    %v94 = vrcp.pop %v93
    %s95 = vtos %v94
    %s96 = smul.f32 2.0, %s95
    %s97 = sadd.s32 %s72, 5
    %s98 = scvt.s32.f32 %s97
    %v99 = vstv %s98
    %v100 = vrcp.pop %v99
    %s101 = vtos %v100
    %s102 = smul.f32 2.0, %s101
    %s103 = sadd.s32 %s72, 6
    %s104 = scvt.s32.f32 %s103
    %v105 = vstv %s104
    %v106 = vrcp.pop %v105
    %s107 = vtos %v106
    %s108 = smul.f32 2.0, %s107
    %s109 = sadd.s32 %s72, 7
    %s110 = scvt.s32.f32 %s109
    %v111 = vstv %s110
    %v112 = vrcp.pop %v111
    %s113 = vtos %v112
    %s114 = smul.f32 2.0, %s113
    %s115 = sadd.s32 %s72, 8
    %s116 = scvt.s32.f32 %s115
    %v117 = vstv %s116
    %v118 = vrcp.pop %v117
    %s119 = vtos %v118
    %s120 = smul.f32 2.0, %s119
    %v121 = vld [vmem:[#allocation2] sm:$0xff]
    %v122 = vld [vmem:[#allocation2 + $0x8] sm:$0xff]
    %v123 = vld [vmem:[#allocation2 + $0x10] sm:$0xff]
    %v124 = vld [vmem:[#allocation2 + $0x18] sm:$0xff]
    %v125 = vld [vmem:[#allocation9] sm:$0xff]
    %v126 = vld [vmem:[#allocation9 + $0x8] sm:$0xff]
    %v127 = vld [vmem:[#allocation9 + $0x10] sm:$0xff]
    %v128 = vld [vmem:[#allocation9 + $0x18] sm:$0xff]
    %v129 = vld [vmem:[#allocation3] sm:$0xff]
    %v130 = vld [vmem:[#allocation3 + $0x8] sm:$0xff]
    %v131 = vld [vmem:[#allocation3 + $0x10] sm:$0xff]
    %v132 = vld [vmem:[#allocation3 + $0x18] sm:$0xff]
    %v133 = vld [vmem:[#allocation7] sm:$0xff]
    %v134 = vunpack.c.0.s8 %v133
    %v135 = vunpack.c.1.s8 %v133
    %v136 = vunpack.c.2.s8 %v133
    %v137 = vunpack.c.3.s8 %v133
    %v138 = vcvt.s32.f32 %v134
    %v139 = vcvt.s32.f32 %v135
    %v140 = vcvt.s32.f32 %v136
    %v141 = vcvt.s32.f32 %v137
    %v142 = vadd.f32 %v121, %v138
    %v143 = vadd.f32 %v122, %v139
    %v144 = vadd.f32 %v123, %v140
    %v145 = vadd.f32 %v124, %v141
    %v146 = vstv %s78
    %v147 = vmul.f32 %v142, %v146
    %v148 = vmul.f32 %v143, %v146
    %v149 = vmul.f32 %v144, %v146
    %v150 = vmul.f32 %v145, %v146
    %v151 = vsub.f32 %v147, %v129
    %v152 = vsub.f32 %v148, %v130
    %v153 = vsub.f32 %v149, %v131
    %v154 = vsub.f32 %v150, %v132
    %v155 = vand.u32 2147483647, %v151
    %v156 = vand.u32 2147483647, %v152
    %v157 = vand.u32 2147483647, %v153
    %v158 = vand.u32 2147483647, %v154
    %vm159 = vcmp.gt.f32.partialorder %v155, 0.05
    %vm160 = vcmp.gt.f32.partialorder %v156, 0.05
    %vm161 = vcmp.gt.f32.partialorder %v157, 0.05
    %vm162 = vcmp.gt.f32.partialorder %v158, 0.05
    %v163 = vstv %s74
    %v164 = vsel %vm159, %v163, %v125
    %v165 = vsel %vm160, %v163, %v126
    %v166 = vsel %vm161, %v163, %v127
    %v167 = vsel %vm162, %v163, %v128
    %s168 = sadd.s32 0, 1
    %s169 = smul.addr %s168, 8
    %s170 = scalar_lea.vmem [#allocation7], %s169
    %v171 = vld [vmem:[%s170] sm:$0xff]
    %v172 = vunpack.c.0.s8 %v171
    %v173 = vunpack.c.1.s8 %v171
    %v174 = vunpack.c.2.s8 %v171
    %v175 = vunpack.c.3.s8 %v171
    %v176 = vcvt.s32.f32 %v172
    %v177 = vcvt.s32.f32 %v173
    %v178 = vcvt.s32.f32 %v174
    %v179 = vcvt.s32.f32 %v175
    %v180 = vadd.f32 %v142, %v176
    %v181 = vadd.f32 %v143, %v177
    %v182 = vadd.f32 %v144, %v178
    %v183 = vadd.f32 %v145, %v179
    %v184 = vstv %s84
    %v185 = vmul.f32 %v180, %v184
    %v186 = vmul.f32 %v181, %v184
    %v187 = vmul.f32 %v182, %v184
    %v188 = vmul.f32 %v183, %v184
    %v189 = vsub.f32 %v185, %v129
    %v190 = vsub.f32 %v186, %v130
    %v191 = vsub.f32 %v187, %v131
    %v192 = vsub.f32 %v188, %v132
    %v193 = vand.u32 2147483647, %v189
    %v194 = vand.u32 2147483647, %v190
    %v195 = vand.u32 2147483647, %v191
    %v196 = vand.u32 2147483647, %v192
    %vm197 = vcmp.gt.f32.partialorder %v193, 0.05
    %vm198 = vcmp.gt.f32.partialorder %v194, 0.05
    %vm199 = vcmp.gt.f32.partialorder %v195, 0.05
    %vm200 = vcmp.gt.f32.partialorder %v196, 0.05
    %v201 = vstv %s80
    %v202 = vsel %vm197, %v201, %v164
    %v203 = vsel %vm198, %v201, %v165
    %v204 = vsel %vm199, %v201, %v166
    %v205 = vsel %vm200, %v201, %v167
    %s206 = sadd.s32 0, 2
    %s207 = smul.addr %s206, 8
    %s208 = scalar_lea.vmem [#allocation7], %s207
    %v209 = vld [vmem:[%s208] sm:$0xff]
    %v210 = vunpack.c.0.s8 %v209
    %v211 = vunpack.c.1.s8 %v209
    %v212 = vunpack.c.2.s8 %v209
    %v213 = vunpack.c.3.s8 %v209
    %v214 = vcvt.s32.f32 %v210
    %v215 = vcvt.s32.f32 %v211
    %v216 = vcvt.s32.f32 %v212
    %v217 = vcvt.s32.f32 %v213
    %v218 = vadd.f32 %v180, %v214
    %v219 = vadd.f32 %v181, %v215
    %v220 = vadd.f32 %v182, %v216
    %v221 = vadd.f32 %v183, %v217
    %v222 = vstv %s90
    %v223 = vmul.f32 %v218, %v222
    %v224 = vmul.f32 %v219, %v222
    %v225 = vmul.f32 %v220, %v222
    %v226 = vmul.f32 %v221, %v222
    %v227 = vsub.f32 %v223, %v129
    %v228 = vsub.f32 %v224, %v130
    %v229 = vsub.f32 %v225, %v131
    %v230 = vsub.f32 %v226, %v132
    %v231 = vand.u32 2147483647, %v227
    %v232 = vand.u32 2147483647, %v228
    %v233 = vand.u32 2147483647, %v229
    %v234 = vand.u32 2147483647, %v230
    %vm235 = vcmp.gt.f32.partialorder %v231, 0.05
    %vm236 = vcmp.gt.f32.partialorder %v232, 0.05
    %vm237 = vcmp.gt.f32.partialorder %v233, 0.05
    %vm238 = vcmp.gt.f32.partialorder %v234, 0.05
    %v239 = vstv %s86
    %v240 = vsel %vm235, %v239, %v202
    %v241 = vsel %vm236, %v239, %v203
    %v242 = vsel %vm237, %v239, %v204
    %v243 = vsel %vm238, %v239, %v205
    %s244 = sadd.s32 0, 3
    %s245 = smul.addr %s244, 8
    %s246 = scalar_lea.vmem [#allocation7], %s245
    %v247 = vld [vmem:[%s246] sm:$0xff]
    %v248 = vunpack.c.0.s8 %v247
    %v249 = vunpack.c.1.s8 %v247
    %v250 = vunpack.c.2.s8 %v247
    %v251 = vunpack.c.3.s8 %v247
    %v252 = vcvt.s32.f32 %v248
    %v253 = vcvt.s32.f32 %v249
    %v254 = vcvt.s32.f32 %v250
    %v255 = vcvt.s32.f32 %v251
    %v256 = vadd.f32 %v218, %v252
    %v257 = vadd.f32 %v219, %v253
    %v258 = vadd.f32 %v220, %v254
    %v259 = vadd.f32 %v221, %v255
    %v260 = vstv %s96
    %v261 = vmul.f32 %v256, %v260
    %v262 = vmul.f32 %v257, %v260
    %v263 = vmul.f32 %v258, %v260
    %v264 = vmul.f32 %v259, %v260
    %v265 = vsub.f32 %v261, %v129
    %v266 = vsub.f32 %v262, %v130
    %v267 = vsub.f32 %v263, %v131
    %v268 = vsub.f32 %v264, %v132
    %v269 = vand.u32 2147483647, %v265
    %v270 = vand.u32 2147483647, %v266
    %v271 = vand.u32 2147483647, %v267
    %v272 = vand.u32 2147483647, %v268
    %vm273 = vcmp.gt.f32.partialorder %v269, 0.05
    %vm274 = vcmp.gt.f32.partialorder %v270, 0.05
    %vm275 = vcmp.gt.f32.partialorder %v271, 0.05
    %vm276 = vcmp.gt.f32.partialorder %v272, 0.05
    %v277 = vstv %s92
    %v278 = vsel %vm273, %v277, %v240
    %v279 = vsel %vm274, %v277, %v241
    %v280 = vsel %vm275, %v277, %v242
    %v281 = vsel %vm276, %v277, %v243
    %s282 = sadd.s32 0, 4
    %s283 = smul.addr %s282, 8
    %s284 = scalar_lea.vmem [#allocation7], %s283
    %v285 = vld [vmem:[%s284] sm:$0xff]
    %v286 = vunpack.c.0.s8 %v285
    %v287 = vunpack.c.1.s8 %v285
    %v288 = vunpack.c.2.s8 %v285
    %v289 = vunpack.c.3.s8 %v285
    %v290 = vcvt.s32.f32 %v286
    %v291 = vcvt.s32.f32 %v287
    %v292 = vcvt.s32.f32 %v288
    %v293 = vcvt.s32.f32 %v289
    %v294 = vadd.f32 %v256, %v290
    %v295 = vadd.f32 %v257, %v291
    %v296 = vadd.f32 %v258, %v292
    %v297 = vadd.f32 %v259, %v293
    %v298 = vstv %s102
    %v299 = vmul.f32 %v294, %v298
    %v300 = vmul.f32 %v295, %v298
    %v301 = vmul.f32 %v296, %v298
    %v302 = vmul.f32 %v297, %v298
    %v303 = vsub.f32 %v299, %v129
    %v304 = vsub.f32 %v300, %v130
    %v305 = vsub.f32 %v301, %v131
    %v306 = vsub.f32 %v302, %v132
    %v307 = vand.u32 2147483647, %v303
    %v308 = vand.u32 2147483647, %v304
    %v309 = vand.u32 2147483647, %v305
    %v310 = vand.u32 2147483647, %v306
    %vm311 = vcmp.gt.f32.partialorder %v307, 0.05
    %vm312 = vcmp.gt.f32.partialorder %v308, 0.05
    %vm313 = vcmp.gt.f32.partialorder %v309, 0.05
    %vm314 = vcmp.gt.f32.partialorder %v310, 0.05
    %v315 = vstv %s98
    %v316 = vsel %vm311, %v315, %v278
    %v317 = vsel %vm312, %v315, %v279
    %v318 = vsel %vm313, %v315, %v280
    %v319 = vsel %vm314, %v315, %v281
    %s320 = sadd.s32 0, 5
    %s321 = smul.addr %s320, 8
    %s322 = scalar_lea.vmem [#allocation7], %s321
    %v323 = vld [vmem:[%s322] sm:$0xff]
    %v324 = vunpack.c.0.s8 %v323
    %v325 = vunpack.c.1.s8 %v323
    %v326 = vunpack.c.2.s8 %v323
    %v327 = vunpack.c.3.s8 %v323
    %v328 = vcvt.s32.f32 %v324
    %v329 = vcvt.s32.f32 %v325
    %v330 = vcvt.s32.f32 %v326
    %v331 = vcvt.s32.f32 %v327
    %v332 = vadd.f32 %v294, %v328
    %v333 = vadd.f32 %v295, %v329
    %v334 = vadd.f32 %v296, %v330
    %v335 = vadd.f32 %v297, %v331
    %v336 = vstv %s108
    %v337 = vmul.f32 %v332, %v336
    %v338 = vmul.f32 %v333, %v336
    %v339 = vmul.f32 %v334, %v336
    %v340 = vmul.f32 %v335, %v336
    %v341 = vsub.f32 %v337, %v129
    %v342 = vsub.f32 %v338, %v130
    %v343 = vsub.f32 %v339, %v131
    %v344 = vsub.f32 %v340, %v132
    %v345 = vand.u32 2147483647, %v341
    %v346 = vand.u32 2147483647, %v342
    %v347 = vand.u32 2147483647, %v343
    %v348 = vand.u32 2147483647, %v344
    %vm349 = vcmp.gt.f32.partialorder %v345, 0.05
    %vm350 = vcmp.gt.f32.partialorder %v346, 0.05
    %vm351 = vcmp.gt.f32.partialorder %v347, 0.05
    %vm352 = vcmp.gt.f32.partialorder %v348, 0.05
    %v353 = vstv %s104
    %v354 = vsel %vm349, %v353, %v316
    %v355 = vsel %vm350, %v353, %v317
    %v356 = vsel %vm351, %v353, %v318
    %v357 = vsel %vm352, %v353, %v319
    %s358 = sadd.s32 0, 6
    %s359 = smul.addr %s358, 8
    %s360 = scalar_lea.vmem [#allocation7], %s359
    %v361 = vld [vmem:[%s360] sm:$0xff]
    %v362 = vunpack.c.0.s8 %v361
    %v363 = vunpack.c.1.s8 %v361
    %v364 = vunpack.c.2.s8 %v361
    %v365 = vunpack.c.3.s8 %v361
    %v366 = vcvt.s32.f32 %v362
    %v367 = vcvt.s32.f32 %v363
    %v368 = vcvt.s32.f32 %v364
    %v369 = vcvt.s32.f32 %v365
    %v370 = vadd.f32 %v332, %v366
    %v371 = vadd.f32 %v333, %v367
    %v372 = vadd.f32 %v334, %v368
    %v373 = vadd.f32 %v335, %v369
    %v374 = vstv %s114
    %v375 = vmul.f32 %v370, %v374
    %v376 = vmul.f32 %v371, %v374
    %v377 = vmul.f32 %v372, %v374
    %v378 = vmul.f32 %v373, %v374
    %v379 = vsub.f32 %v375, %v129
    %v380 = vsub.f32 %v376, %v130
    %v381 = vsub.f32 %v377, %v131
    %v382 = vsub.f32 %v378, %v132
    %v383 = vand.u32 2147483647, %v379
    %v384 = vand.u32 2147483647, %v380
    %v385 = vand.u32 2147483647, %v381
    %v386 = vand.u32 2147483647, %v382
    %vm387 = vcmp.gt.f32.partialorder %v383, 0.05
    %vm388 = vcmp.gt.f32.partialorder %v384, 0.05
    %vm389 = vcmp.gt.f32.partialorder %v385, 0.05
    %vm390 = vcmp.gt.f32.partialorder %v386, 0.05
    %v391 = vstv %s110
    %v392 = vsel %vm387, %v391, %v354
    %v393 = vsel %vm388, %v391, %v355
    %v394 = vsel %vm389, %v391, %v356
    %v395 = vsel %vm390, %v391, %v357
    %s396 = sadd.s32 0, 7
    %s397 = smul.addr %s396, 8
    %s398 = scalar_lea.vmem [#allocation7], %s397
    %v399 = vld [vmem:[%s398] sm:$0xff]
    %v400 = vunpack.c.0.s8 %v399
    %v401 = vunpack.c.1.s8 %v399
    %v402 = vunpack.c.2.s8 %v399
    %v403 = vunpack.c.3.s8 %v399
    %v404 = vcvt.s32.f32 %v400
    %v405 = vcvt.s32.f32 %v401
    %v406 = vcvt.s32.f32 %v402
    %v407 = vcvt.s32.f32 %v403
    %v408 = vadd.f32 %v370, %v404
    %v409 = vadd.f32 %v371, %v405
    %v410 = vadd.f32 %v372, %v406
    %v411 = vadd.f32 %v373, %v407
    %v412 = vstv %s120
    %v413 = vmul.f32 %v408, %v412
    %v414 = vmul.f32 %v409, %v412
    %v415 = vmul.f32 %v410, %v412
    %v416 = vmul.f32 %v411, %v412
    %v417 = vsub.f32 %v413, %v129
    %v418 = vsub.f32 %v414, %v130
    %v419 = vsub.f32 %v415, %v131
    %v420 = vsub.f32 %v416, %v132
    %v421 = vand.u32 2147483647, %v417
    %v422 = vand.u32 2147483647, %v418
    %v423 = vand.u32 2147483647, %v419
    %v424 = vand.u32 2147483647, %v420
    %vm425 = vcmp.gt.f32.partialorder %v421, 0.05
    %vm426 = vcmp.gt.f32.partialorder %v422, 0.05
    %vm427 = vcmp.gt.f32.partialorder %v423, 0.05
    %vm428 = vcmp.gt.f32.partialorder %v424, 0.05
    %v429 = vstv %s116
    %v430 = vsel %vm425, %v429, %v392
    %v431 = vsel %vm426, %v429, %v393
    %v432 = vsel %vm427, %v429, %v394
    %v433 = vsel %vm428, %v429, %v395
    %434 = vst [vmem:[#allocation2] sm:$0xff] %v408
    %435 = vst [vmem:[#allocation2 + $0x8] sm:$0xff] %v409
    %436 = vst [vmem:[#allocation2 + $0x10] sm:$0xff] %v410
    %437 = vst [vmem:[#allocation2 + $0x18] sm:$0xff] %v411
    %438 = vst [vmem:[#allocation9] sm:$0xff] %v430
    %439 = vst [vmem:[#allocation9 + $0x8] sm:$0xff] %v431
    %440 = vst [vmem:[#allocation9 + $0x10] sm:$0xff] %v432
    %441 = vst [vmem:[#allocation9 + $0x18] sm:$0xff] %v433
    // Predicated region
    $region22: #{tpu_custom_call.1} parent=1 // pred_check
      %p442 = pneg %p40
    $region23: #{tpu_custom_call.1} parent=1 // pred_check_branch
      %444 = sbr.rel (%p442) target = $region25
    $region24: #{tpu_custom_call.1} parent=1 // pred_region
      %v445 = vld [vmem:[#allocation9] sm:$0xff]
      %v446 = vld [vmem:[#allocation9 + $0x8] sm:$0xff]
      %v447 = vld [vmem:[#allocation9 + $0x10] sm:$0xff]
      %v448 = vld [vmem:[#allocation9 + $0x18] sm:$0xff]
      %v449 = vmax.f32 %v445, 1.0
      %v450 = vmax.f32 %v446, 1.0
      %v451 = vmax.f32 %v447, 1.0
      %v452 = vmax.f32 %v448, 1.0
      %v453 = vmin.f32 %v449, 8.0
      %v454 = vmin.f32 %v450, 8.0
      %v455 = vmin.f32 %v451, 8.0
      %v456 = vmin.f32 %v452, 8.0
      %v457 = vmul.f32 %v453, 0.125
      %v458 = vmul.f32 %v454, 0.125
      %v459 = vmul.f32 %v455, 0.125
      %v460 = vmul.f32 %v456, 0.125
      %v461 = vsub.f32 1.0, %v457
      %v462 = vsub.f32 1.0, %v458
      %v463 = vsub.f32 1.0, %v459
      %v464 = vsub.f32 1.0, %v460
      %465 = vst [vmem:[#allocation9] sm:$0xff] %v461
      %466 = vst [vmem:[#allocation9 + $0x8] sm:$0xff] %v462
      %467 = vst [vmem:[#allocation9 + $0x10] sm:$0xff] %v463
      %468 = vst [vmem:[#allocation9 + $0x18] sm:$0xff] %v464
    $region25: #{tpu_custom_call.1} parent=1 // pred_fallthru
      _
    // Predicated region
    $region26: #{tpu_custom_call.1} parent=1 // pred_check
      _
    $region27: #{tpu_custom_call.1} parent=1 // pred_check_branch
      %470 = sbr.rel (0) target = $region29
    $region28: #{tpu_custom_call.1} parent=1 // pred_region
      %s472 = ssub.s32 512, 512
      %473 = vsyncadd [#allocation6], %s472
      %s474 = sshll.u32 [#allocation9], 4
      %s475 = int_to_ptr.vmem [resolvable:$true] %s474
      %480 = dma.vmem_to_hbm [thread:$0]  %s475, 512, %s2, [#allocation6], 128, 128, 8
    $region29: #{tpu_custom_call.1} parent=1 // pred_fallthru
      _
    // Predicated region
    $region30: #{tpu_custom_call.1} parent=1 // pred_check
      _
    $region31: #{tpu_custom_call.1} parent=1 // pred_check_branch
      %482 = sbr.rel (0) target = $region33
    $region32: #{tpu_custom_call.1} parent=1 // pred_region
      %483 = dma.done [#allocation6], 512
    $region33: #{tpu_custom_call.1} parent=1 // pred_fallthru
      _
    %484 = vsyncpa [#allocation5], 1
    %485 = vsyncpa [#allocation8], 1
    %486 = vsyncpa [#allocation6], 1

</llo_original>
